<compile_context>
chip_gen: v5e
topology: v5e:2x2
jax: 0.10.0
libtpu: 0.0.40
codegen_flags: <defaults>
</compile_context>

<pallas_src>
import jax
import jax.numpy as jnp
from jax.experimental import pallas as pl
from jax.experimental.pallas import tpu as pltpu


def _round_up(x, m):
    return ((x + m - 1) // m) * m


def make_neubpr_kernel(num_fc, weight_decay, d_user, d_item, tb):
    """Kernel body. All activations are feature-major: (features, batch-lanes)."""

    def kernel(*refs):
        # refs layout:
        #   u_ref   : (2*d_user, TB)    gathered [W_mlp || W_mf] rows for u
        #   ij_ref  : (2*d_item, 2*TB)  gathered [H_mlp || H_mf] rows; i-tile
        #                               then j-tile packed on the lane axis
        #   w0u^T, w0i^T, b0            first FC layer (user / item halves)
        #   (wk^T, bk) k=1..num_fc-1    remaining FC layers
        #   wa_mlp, wa_mf               affine head split (bias cancels)
        #   out_ref : (1, TB)
        u_ref, ij_ref, w0u_r, w0i_r, b0_r = refs[:5]
        fc_refs = refs[5:5 + 2 * (num_fc - 1)]
        wa_mlp_r = refs[5 + 2 * (num_fc - 1)]
        wa_mf_r = refs[6 + 2 * (num_fc - 1)]
        out_ref = refs[7 + 2 * (num_fc - 1)]

        f32 = jnp.float32
        u_blk = u_ref[...].astype(f32)       # (2*d_user, TB)   (bf16 -> f32 upcast)
        ij_blk = ij_ref[...].astype(f32)     # (2*d_item, 2*TB)
        u_mlp, u_mf = u_blk[:d_user], u_blk[d_user:]
        ij_mlp, ij_mf = ij_blk[:d_item], ij_blk[d_item:]

        # ---- MLP tower: user half of layer 0 computed once, i|j batched ----
        u_pre = jnp.dot(w0u_r[...], u_mlp, preferred_element_type=f32) + b0_r[...]
        pre_ij = jnp.dot(w0i_r[...], ij_mlp, preferred_element_type=f32)
        h_ij = jnp.maximum(pre_ij + jnp.concatenate([u_pre, u_pre], axis=1), 0.0)
        for k in range(num_fc - 1):
            w = fc_refs[2 * k][...]          # (out, in)
            b = fc_refs[2 * k + 1][...]      # (out, 1)
            h_ij = jnp.maximum(jnp.dot(w, h_ij, preferred_element_type=f32) + b, 0.0)

        # ---- head on differences (affine bias cancels in x_ui - x_uj) ------
        d_mlp = h_ij[:, :tb] - h_ij[:, tb:]                 # (L_last, TB)
        d_mf = u_mf * (ij_mf[:, :tb] - ij_mf[:, tb:])       # (d_user, TB)
        x_uij = (jnp.sum(d_mlp * wa_mlp_r[...], axis=0, keepdims=True)
                 + jnp.sum(d_mf * wa_mf_r[...], axis=0, keepdims=True))   # (1, TB)

        # numerically stable logsigmoid: min(x,0) - log(1 + exp(-|x|))
        log_prob = jnp.minimum(x_uij, 0.0) - jnp.log(1.0 + jnp.exp(-jnp.abs(x_uij)))

        # ---- L2 regularization on the gathered embeddings -------------------
        def nrm(x):
            return jnp.sqrt(jnp.sum(x * x, axis=0, keepdims=True))

        reg = weight_decay * (nrm(u_mlp) + nrm(u_mf)
                              + nrm(ij_mlp[:, :tb]) + nrm(ij_mf[:, :tb])
                              + nrm(ij_mlp[:, tb:]) + nrm(ij_mf[:, tb:]))

        out_ref[...] = -log_prob + reg       # lane-dense (1, TB) store

    return kernel


def prepare_neubpr(params, emb_dtype=jnp.bfloat16):
    """One-time parameter preprocessing: merged feature-major embedding tables
    plus transposed / split FC and affine weights. Call once, reuse per step."""
    W_mlp, H_mlp, W_mf, H_mf, fc_params, (wa, ba) = params
    d_user = W_mlp.shape[1]
    d_item = H_mlp.shape[1]
    f32 = jnp.float32

    # Merged feature-major tables -> one gather per index stream.
    wu_t = jnp.concatenate([W_mlp, W_mf], axis=1).astype(emb_dtype).T  # (2*d_user, U)
    hi_t = jnp.concatenate([H_mlp, H_mf], axis=1).astype(emb_dtype).T  # (2*d_item, I)

    w0, b0 = fc_params[0]
    weights = [w0[:d_user, :].T.astype(f32),          # (L1, d_user)
               w0[d_user:, :].T.astype(f32),          # (L1, d_item)
               b0.reshape(-1, 1).astype(f32)]         # (L1, 1)
    for (w, b) in fc_params[1:]:
        weights += [w.T.astype(f32), b.reshape(-1, 1).astype(f32)]
    l_last = fc_params[-1][0].shape[1]
    weights += [wa[:l_last, :].astype(f32),           # (L_last, 1)
                wa[l_last:, :].astype(f32)]           # (d_user, 1)  (ba cancels)

    return dict(wu_t=wu_t, hi_t=hi_t, weights=tuple(weights),
                d_user=d_user, d_item=d_item, num_fc=len(fc_params))


def neubpr_forward(prepared, u, i, j, *, weight_decay, block_b=4096):
    """BPR loss per example, shape (B,). Mirrors NeuBPR.forward semantics."""
    wu_t, hi_t = prepared["wu_t"], prepared["hi_t"]
    weights = list(prepared["weights"])
    d_user = prepared["d_user"]
    d_item = prepared["d_item"]
    num_fc = prepared["num_fc"]

    B = int(u.shape[0])

    # Batch tile: as large as possible (amortize ~0.35us per-grid-step
    # overhead), but (a) no wider than the padded batch and (b) keep G >= 2
    # whenever the batch allows it so v7x's two TensorCores both get work.
    tb = int(block_b)
    tb = min(tb, _round_up(max(B, 1), 128))
    if B > 128:
        tb = min(tb, _round_up((B + 1) // 2, 128))
    tb = max(tb, 128)
    assert tb % 128 == 0

    b_pad = _round_up(B, tb)
    g = b_pad // tb
    pad = b_pad - B

    # Pad the index vectors (index 0 -> real rows, keeps the reg math finite)
    # and gather straight into the kernel layout:
    #   u  -> (2*d_user, B_pad)
    #   i|j -> tile-interleaved (2*d_item, 2*B_pad): per grid step b, columns
    #          [b*2TB, b*2TB+TB) are the i tile and the next TB are the j tile.
    u_pad = jnp.pad(u.astype(jnp.int32), (0, pad))
    i_pad = jnp.pad(i.astype(jnp.int32), (0, pad))
    j_pad = jnp.pad(j.astype(jnp.int32), (0, pad))
    ij_idx = jnp.stack([i_pad.reshape(g, tb), j_pad.reshape(g, tb)],
                       axis=1).reshape(-1)                    # (2*B_pad,)
    u_g = jnp.take(wu_t, u_pad, axis=1)                        # (2*d_user, B_pad)
    ij_g = jnp.take(hi_t, ij_idx, axis=1)                      # (2*d_item, 2*B_pad)

    emb_specs = [pl.BlockSpec((2 * d_user, tb), lambda b: (0, b)),
                 pl.BlockSpec((2 * d_item, 2 * tb), lambda b: (0, b))]
    w_specs = [pl.BlockSpec(w.shape, lambda b: (0, 0)) for w in weights]

    kernel = make_neubpr_kernel(num_fc, float(weight_decay), d_user, d_item, tb)

    # Advisory cost estimate so XLA can overlap the gathers with the kernel.
    l1 = weights[0].shape[0]
    flops_col = 2 * l1 * d_user + 2 * 2 * l1 * d_item
    for k in range(num_fc - 1):
        w = weights[3 + 2 * k]
        flops_col += 2 * 2 * int(w.shape[0]) * int(w.shape[1])
    l_last = weights[-2].shape[0]
    flops_col += 4 * d_user + 2 * (l_last + d_user) + 32
    bytes_emb = (int(u_g.size) * u_g.dtype.itemsize
                 + int(ij_g.size) * ij_g.dtype.itemsize)
    bytes_w = sum(int(w.size) * 4 for w in weights)
    cost = pl.CostEstimate(flops=int(flops_col) * b_pad,
                           transcendentals=8 * b_pad,
                           bytes_accessed=bytes_emb + bytes_w * g + b_pad * 4)

    out = pl.pallas_call(
        kernel,
        out_shape=jax.ShapeDtypeStruct((1, b_pad), jnp.float32),
        grid=(g,),
        in_specs=emb_specs + w_specs,
        out_specs=pl.BlockSpec((1, tb), lambda b: (0, b)),
        compiler_params=pltpu.CompilerParams(
            dimension_semantics=("parallel",),
            vmem_limit_bytes=48 * 1024 * 1024),
        cost_estimate=cost,
    )(u_g, ij_g, *weights)
    return out[0, :B]


def neubpr_reference(params, u, i, j, *, weight_decay):
    """Pure-JAX reference for the correctness check."""
    W_mlp, H_mlp, W_mf, H_mf, fc_params, (wa, ba) = params

    def predict(uu, ii):
        um = W_mlp[uu]
        im = H_mlp[ii]
        umf = W_mf[uu]
        imf = H_mf[ii]
        mlp = jnp.concatenate([um, im], axis=-1)
        for (w, b) in fc_params:
            mlp = jnp.maximum(mlp @ w + b, 0.0)
        vec = jnp.concatenate([mlp, umf * imf], axis=-1)
        return (vec @ wa + ba)[:, 0]

    x_uij = predict(u, i) - predict(u, j)
    log_prob = jax.nn.log_sigmoid(x_uij)

    def norm(x):
        return jnp.sqrt(jnp.sum(x * x, axis=1))

    reg = weight_decay * (norm(W_mlp[u]) + norm(W_mf[u]) + norm(H_mlp[i])
                          + norm(H_mf[i]) + norm(H_mlp[j]) + norm(H_mf[j]))
    return -log_prob + reg


if __name__ == "__main__":
    import numpy as np

    key = jax.random.PRNGKey(0)

    # Small synthetic config (args.*): layers="64|32|16", emb dims = 32.
    user_size, item_size = 10, 20
    user_emb_dim = item_emb_dim = 32
    layers = [64, 32, 16]          # layers[0] == user_emb_dim + item_emb_dim
    weight_decay = 0.01
    B = 200                        # not a multiple of the tile -> exercises padding

    ks = jax.random.split(key, 16)

    def xavier(k, shape):
        std = (2.0 / (shape[0] + shape[1])) ** 0.5
        return (std * jax.random.normal(k, shape)).astype(jnp.float32)

    W_mlp = xavier(ks[0], (user_size, user_emb_dim))
    H_mlp = xavier(ks[1], (item_size, item_emb_dim))
    W_mf = xavier(ks[2], (user_size, user_emb_dim))
    H_mf = xavier(ks[3], (item_size, item_emb_dim))

    fc_params = []
    kidx = 4
    for in_size, out_size in zip(layers[:-1], layers[1:]):
        w = xavier(ks[kidx], (in_size, out_size))        # stored (in, out)
        b = (0.01 * jax.random.normal(ks[kidx + 1], (out_size,))).astype(jnp.float32)
        fc_params.append((w, b))
        kidx += 2

    affine_in = layers[-1] + user_emb_dim
    wa = xavier(ks[kidx], (affine_in, 1))
    ba = (0.01 * jax.random.normal(ks[kidx + 1], (1,))).astype(jnp.float32)
    kidx += 2

    params = (W_mlp, H_mlp, W_mf, H_mf, fc_params, (wa, ba))

    u = jax.random.randint(ks[kidx], (B,), 0, user_size)
    i = jax.random.randint(ks[kidx + 1], (B,), 0, item_size)
    j = jax.random.randint(ks[kidx + 2], (B,), 0, item_size)

    ref = neubpr_reference(params, u, i, j, weight_decay=weight_decay)
    jax.block_until_ready(ref)

    # f32 embedding path (tight-ish tolerance; matmul path differs slightly).
    prep_f32 = prepare_neubpr(params, emb_dtype=jnp.float32)
    loss_f32 = neubpr_forward(prep_f32, u, i, j, weight_decay=weight_decay)
    jax.block_until_ready(loss_f32)
    np.testing.assert_allclose(np.asarray(loss_f32), np.asarray(ref),
                               rtol=5e-3, atol=5e-3)

    # bf16 embedding path (halves the dominant HBM traffic; looser tolerance).
    prep_bf16 = prepare_neubpr(params, emb_dtype=jnp.bfloat16)
    loss_bf16 = neubpr_forward(prep_bf16, u, i, j, weight_decay=weight_decay)
    jax.block_until_ready(loss_bf16)
    np.testing.assert_allclose(np.asarray(loss_bf16), np.asarray(ref),
                               rtol=2e-2, atol=2e-2)

    print("KERNEL_OK")
</pallas_src>

<mosaic_0001>
module attributes {stable_mosaic.version = 11 : i64} {
  func.func @kernel(%arg0: i32, %arg1: memref<64x128xf32, #tpu.memory_space<vmem>>, %arg2: memref<64x256xf32, #tpu.memory_space<vmem>>, %arg3: memref<32x32xf32, #tpu.memory_space<vmem>>, %arg4: memref<32x32xf32, #tpu.memory_space<vmem>>, %arg5: memref<32x1xf32, #tpu.memory_space<vmem>>, %arg6: memref<16x32xf32, #tpu.memory_space<vmem>>, %arg7: memref<16x1xf32, #tpu.memory_space<vmem>>, %arg8: memref<16x1xf32, #tpu.memory_space<vmem>>, %arg9: memref<32x1xf32, #tpu.memory_space<vmem>>, %arg10: memref<1x128xf32, #tpu.memory_space<vmem>>) attributes {dimension_semantics = [#tpu.dimension_semantics<parallel>], iteration_bounds = array<i64: 2>, scalar_prefetch = 0 : i64, scratch_operands = 0 : i64, tpu.core_type = #tpu.core_type<tc>, window_params = [{transform_indices = @transform_0, window_bounds = array<i64: 64, 128>}, {transform_indices = @transform_1, window_bounds = array<i64: 64, 256>}, {pipeline_mode = #tpu.pipeline_mode<synchronous>, transform_indices = @transform_2, window_bounds = array<i64: 32, 32>}, {pipeline_mode = #tpu.pipeline_mode<synchronous>, transform_indices = @transform_3, window_bounds = array<i64: 32, 32>}, {pipeline_mode = #tpu.pipeline_mode<synchronous>, transform_indices = @transform_4, window_bounds = array<i64: 32, 1>}, {pipeline_mode = #tpu.pipeline_mode<synchronous>, transform_indices = @transform_5, window_bounds = array<i64: 16, 32>}, {pipeline_mode = #tpu.pipeline_mode<synchronous>, transform_indices = @transform_6, window_bounds = array<i64: 16, 1>}, {pipeline_mode = #tpu.pipeline_mode<synchronous>, transform_indices = @transform_7, window_bounds = array<i64: 16, 1>}, {pipeline_mode = #tpu.pipeline_mode<synchronous>, transform_indices = @transform_8, window_bounds = array<i64: 32, 1>}, {transform_indices = @transform_9, window_bounds = array<i64: 1, 128>}]} {
    %c0 = arith.constant 0 : index
    %c0_0 = arith.constant 0 : index
    %0 = vector.load %arg1[%c0, %c0_0] : memref<64x128xf32, #tpu.memory_space<vmem>>, vector<64x128xf32>
    %c0_1 = arith.constant 0 : index
    %c0_2 = arith.constant 0 : index
    %1 = vector.load %arg2[%c0_1, %c0_2] : memref<64x256xf32, #tpu.memory_space<vmem>>, vector<64x256xf32>
    %2 = vector.extract_strided_slice %0 {offsets = [0, 0], sizes = [32, 128], strides = [1, 1]} : vector<64x128xf32> to vector<32x128xf32>
    %3 = vector.extract_strided_slice %0 {offsets = [32, 0], sizes = [32, 128], strides = [1, 1]} : vector<64x128xf32> to vector<32x128xf32>
    %4 = vector.extract_strided_slice %1 {offsets = [0, 0], sizes = [32, 256], strides = [1, 1]} : vector<64x256xf32> to vector<32x256xf32>
    %5 = vector.extract_strided_slice %1 {offsets = [32, 0], sizes = [32, 256], strides = [1, 1]} : vector<64x256xf32> to vector<32x256xf32>
    %c0_3 = arith.constant 0 : index
    %c0_4 = arith.constant 0 : index
    %6 = vector.load %arg3[%c0_3, %c0_4] : memref<32x32xf32, #tpu.memory_space<vmem>>, vector<32x32xf32>
    %cst = arith.constant dense<0.000000e+00> : vector<32x128xf32>
    %7 = tpu.matmul %6, %2, %cst {dimension_numbers = #tpu.dot_dimension_numbers<[1], [0], [0], [1], [0, 0, 1, 1], [], []>} : vector<32x32xf32>, vector<32x128xf32>, vector<32x128xf32> -> vector<32x128xf32>
    %c0_5 = arith.constant 0 : index
    %c0_6 = arith.constant 0 : index
    %8 = vector.load %arg5[%c0_5, %c0_6] : memref<32x1xf32, #tpu.memory_space<vmem>>, vector<32x1xf32>
    %9 = vector.broadcast %8 : vector<32x1xf32> to vector<32x128xf32>
    %10 = arith.addf %7, %9 : vector<32x128xf32>
    %c0_7 = arith.constant 0 : index
    %c0_8 = arith.constant 0 : index
    %11 = vector.load %arg4[%c0_7, %c0_8] : memref<32x32xf32, #tpu.memory_space<vmem>>, vector<32x32xf32>
    %cst_9 = arith.constant dense<0.000000e+00> : vector<32x256xf32>
    %12 = tpu.matmul %11, %4, %cst_9 {dimension_numbers = #tpu.dot_dimension_numbers<[1], [0], [0], [1], [0, 0, 1, 1], [], []>} : vector<32x32xf32>, vector<32x256xf32>, vector<32x256xf32> -> vector<32x256xf32>
    %13 = tpu.concatenate %10, %10 in 1 : vector<32x128xf32>, vector<32x128xf32> -> vector<32x256xf32>
    %14 = arith.addf %12, %13 : vector<32x256xf32>
    %cst_10 = arith.constant 0.000000e+00 : f32
    %15 = vector.broadcast %cst_10 : f32 to vector<32x256xf32>
    %16 = arith.maximumf %14, %15 : vector<32x256xf32>
    %c0_11 = arith.constant 0 : index
    %c0_12 = arith.constant 0 : index
    %17 = vector.load %arg6[%c0_11, %c0_12] : memref<16x32xf32, #tpu.memory_space<vmem>>, vector<16x32xf32>
    %c0_13 = arith.constant 0 : index
    %c0_14 = arith.constant 0 : index
    %18 = vector.load %arg7[%c0_13, %c0_14] : memref<16x1xf32, #tpu.memory_space<vmem>>, vector<16x1xf32>
    %cst_15 = arith.constant dense<0.000000e+00> : vector<16x256xf32>
    %19 = tpu.matmul %17, %16, %cst_15 {dimension_numbers = #tpu.dot_dimension_numbers<[1], [0], [0], [1], [0, 0, 1, 1], [], []>} : vector<16x32xf32>, vector<32x256xf32>, vector<16x256xf32> -> vector<16x256xf32>
    %20 = vector.broadcast %18 : vector<16x1xf32> to vector<16x256xf32>
    %21 = arith.addf %19, %20 : vector<16x256xf32>
    %cst_16 = arith.constant 0.000000e+00 : f32
    %22 = vector.broadcast %cst_16 : f32 to vector<16x256xf32>
    %23 = arith.maximumf %21, %22 : vector<16x256xf32>
    %24 = vector.extract_strided_slice %23 {offsets = [0, 0], sizes = [16, 128], strides = [1, 1]} : vector<16x256xf32> to vector<16x128xf32>
    %25 = vector.extract_strided_slice %23 {offsets = [0, 128], sizes = [16, 128], strides = [1, 1]} : vector<16x256xf32> to vector<16x128xf32>
    %26 = arith.subf %24, %25 : vector<16x128xf32>
    %27 = vector.extract_strided_slice %5 {offsets = [0, 0], sizes = [32, 128], strides = [1, 1]} : vector<32x256xf32> to vector<32x128xf32>
    %28 = vector.extract_strided_slice %5 {offsets = [0, 128], sizes = [32, 128], strides = [1, 1]} : vector<32x256xf32> to vector<32x128xf32>
    %29 = arith.subf %27, %28 : vector<32x128xf32>
    %30 = arith.mulf %3, %29 : vector<32x128xf32>
    %c0_17 = arith.constant 0 : index
    %c0_18 = arith.constant 0 : index
    %31 = vector.load %arg8[%c0_17, %c0_18] : memref<16x1xf32, #tpu.memory_space<vmem>>, vector<16x1xf32>
    %32 = vector.broadcast %31 : vector<16x1xf32> to vector<16x128xf32>
    %33 = arith.mulf %26, %32 : vector<16x128xf32>
    %cst_19 = arith.constant dense<0.000000e+00> : vector<128xf32>
    %34 = vector.multi_reduction <add>, %33, %cst_19 [0] : vector<16x128xf32> to vector<128xf32>
    %35 = vector.shape_cast %34 : vector<128xf32> to vector<1x128xf32>
    %c0_20 = arith.constant 0 : index
    %c0_21 = arith.constant 0 : index
    %36 = vector.load %arg9[%c0_20, %c0_21] : memref<32x1xf32, #tpu.memory_space<vmem>>, vector<32x1xf32>
    %37 = vector.broadcast %36 : vector<32x1xf32> to vector<32x128xf32>
    %38 = arith.mulf %30, %37 : vector<32x128xf32>
    %cst_22 = arith.constant dense<0.000000e+00> : vector<128xf32>
    %39 = vector.multi_reduction <add>, %38, %cst_22 [0] : vector<32x128xf32> to vector<128xf32>
    %40 = vector.shape_cast %39 : vector<128xf32> to vector<1x128xf32>
    %41 = arith.addf %35, %40 : vector<1x128xf32>
    %cst_23 = arith.constant 0.000000e+00 : f32
    %42 = vector.broadcast %cst_23 : f32 to vector<1x128xf32>
    %43 = arith.minimumf %41, %42 : vector<1x128xf32>
    %44 = math.absf %41 : vector<1x128xf32>
    %cst_24 = arith.constant 0.000000e+00 : f32
    %45 = vector.broadcast %cst_24 : f32 to vector<1x128xf32>
    %46 = arith.subf %45, %44 : vector<1x128xf32>
    %47 = math.exp %46 : vector<1x128xf32>
    %cst_25 = arith.constant 1.000000e+00 : f32
    %48 = vector.broadcast %cst_25 : f32 to vector<1x128xf32>
    %49 = arith.addf %48, %47 : vector<1x128xf32>
    %50 = math.log %49 : vector<1x128xf32>
    %51 = arith.subf %43, %50 : vector<1x128xf32>
    %52 = arith.mulf %2, %2 : vector<32x128xf32>
    %cst_26 = arith.constant dense<0.000000e+00> : vector<128xf32>
    %53 = vector.multi_reduction <add>, %52, %cst_26 [0] : vector<32x128xf32> to vector<128xf32>
    %54 = vector.shape_cast %53 : vector<128xf32> to vector<1x128xf32>
    %55 = math.sqrt %54 : vector<1x128xf32>
    %56 = arith.mulf %3, %3 : vector<32x128xf32>
    %cst_27 = arith.constant dense<0.000000e+00> : vector<128xf32>
    %57 = vector.multi_reduction <add>, %56, %cst_27 [0] : vector<32x128xf32> to vector<128xf32>
    %58 = vector.shape_cast %57 : vector<128xf32> to vector<1x128xf32>
    %59 = math.sqrt %58 : vector<1x128xf32>
    %60 = arith.addf %55, %59 : vector<1x128xf32>
    %61 = vector.extract_strided_slice %4 {offsets = [0, 0], sizes = [32, 128], strides = [1, 1]} : vector<32x256xf32> to vector<32x128xf32>
    %62 = arith.mulf %61, %61 : vector<32x128xf32>
    %cst_28 = arith.constant dense<0.000000e+00> : vector<128xf32>
    %63 = vector.multi_reduction <add>, %62, %cst_28 [0] : vector<32x128xf32> to vector<128xf32>
    %64 = vector.shape_cast %63 : vector<128xf32> to vector<1x128xf32>
    %65 = math.sqrt %64 : vector<1x128xf32>
    %66 = arith.addf %60, %65 : vector<1x128xf32>
    %67 = vector.extract_strided_slice %5 {offsets = [0, 0], sizes = [32, 128], strides = [1, 1]} : vector<32x256xf32> to vector<32x128xf32>
    %68 = arith.mulf %67, %67 : vector<32x128xf32>
    %cst_29 = arith.constant dense<0.000000e+00> : vector<128xf32>
    %69 = vector.multi_reduction <add>, %68, %cst_29 [0] : vector<32x128xf32> to vector<128xf32>
    %70 = vector.shape_cast %69 : vector<128xf32> to vector<1x128xf32>
    %71 = math.sqrt %70 : vector<1x128xf32>
    %72 = arith.addf %66, %71 : vector<1x128xf32>
    %73 = vector.extract_strided_slice %4 {offsets = [0, 128], sizes = [32, 128], strides = [1, 1]} : vector<32x256xf32> to vector<32x128xf32>
    %74 = arith.mulf %73, %73 : vector<32x128xf32>
    %cst_30 = arith.constant dense<0.000000e+00> : vector<128xf32>
    %75 = vector.multi_reduction <add>, %74, %cst_30 [0] : vector<32x128xf32> to vector<128xf32>
    %76 = vector.shape_cast %75 : vector<128xf32> to vector<1x128xf32>
    %77 = math.sqrt %76 : vector<1x128xf32>
    %78 = arith.addf %72, %77 : vector<1x128xf32>
    %79 = vector.extract_strided_slice %5 {offsets = [0, 128], sizes = [32, 128], strides = [1, 1]} : vector<32x256xf32> to vector<32x128xf32>
    %80 = arith.mulf %79, %79 : vector<32x128xf32>
    %cst_31 = arith.constant dense<0.000000e+00> : vector<128xf32>
    %81 = vector.multi_reduction <add>, %80, %cst_31 [0] : vector<32x128xf32> to vector<128xf32>
    %82 = vector.shape_cast %81 : vector<128xf32> to vector<1x128xf32>
    %83 = math.sqrt %82 : vector<1x128xf32>
    %84 = arith.addf %78, %83 : vector<1x128xf32>
    %cst_32 = arith.constant 0.00999999977 : f32
    %85 = vector.broadcast %cst_32 : f32 to vector<1x128xf32>
    %86 = arith.mulf %85, %84 : vector<1x128xf32>
    %cst_33 = arith.constant 0.000000e+00 : f32
    %87 = vector.broadcast %cst_33 : f32 to vector<1x128xf32>
    %88 = arith.subf %87, %51 : vector<1x128xf32>
    %89 = arith.addf %88, %86 : vector<1x128xf32>
    %c0_34 = arith.constant 0 : index
    %c0_35 = arith.constant 0 : index
    %90 = vector.load %arg10[%c0_34, %c0_35] : memref<1x128xf32, #tpu.memory_space<vmem>>, vector<1x128xf32>
    tpu.vector_store %arg10[%c0_34, %c0_35], %89 {strides = array<i32>} : memref<1x128xf32, #tpu.memory_space<vmem>>, vector<1x128xf32>,
    return
  }
  func.func @transform_0(%arg0: i32) -> (i32, i32) {
    %c0_i32 = arith.constant 0 : i32
    %c0_i32_0 = arith.constant 0 : i32
    return %c0_i32, %arg0 : i32, i32
  }
  func.func @transform_1(%arg0: i32) -> (i32, i32) {
    %c0_i32 = arith.constant 0 : i32
    %c0_i32_0 = arith.constant 0 : i32
    return %c0_i32, %arg0 : i32, i32
  }
  func.func @transform_2(%arg0: i32) -> (i32, i32) {
    %c0_i32 = arith.constant 0 : i32
    %c0_i32_0 = arith.constant 0 : i32
    %c0_i32_1 = arith.constant 0 : i32
    return %c0_i32, %c0_i32_0 : i32, i32
  }
  func.func @transform_3(%arg0: i32) -> (i32, i32) {
    %c0_i32 = arith.constant 0 : i32
    %c0_i32_0 = arith.constant 0 : i32
    %c0_i32_1 = arith.constant 0 : i32
    return %c0_i32, %c0_i32_0 : i32, i32
  }
  func.func @transform_4(%arg0: i32) -> (i32, i32) {
    %c0_i32 = arith.constant 0 : i32
    %c0_i32_0 = arith.constant 0 : i32
    %c0_i32_1 = arith.constant 0 : i32
    return %c0_i32, %c0_i32_0 : i32, i32
  }
  func.func @transform_5(%arg0: i32) -> (i32, i32) {
    %c0_i32 = arith.constant 0 : i32
    %c0_i32_0 = arith.constant 0 : i32
    %c0_i32_1 = arith.constant 0 : i32
    return %c0_i32, %c0_i32_0 : i32, i32
  }
  func.func @transform_6(%arg0: i32) -> (i32, i32) {
    %c0_i32 = arith.constant 0 : i32
    %c0_i32_0 = arith.constant 0 : i32
    %c0_i32_1 = arith.constant 0 : i32
    return %c0_i32, %c0_i32_0 : i32, i32
  }
  func.func @transform_7(%arg0: i32) -> (i32, i32) {
    %c0_i32 = arith.constant 0 : i32
    %c0_i32_0 = arith.constant 0 : i32
    %c0_i32_1 = arith.constant 0 : i32
    return %c0_i32, %c0_i32_0 : i32, i32
  }
  func.func @transform_8(%arg0: i32) -> (i32, i32) {
    %c0_i32 = arith.constant 0 : i32
    %c0_i32_0 = arith.constant 0 : i32
    %c0_i32_1 = arith.constant 0 : i32
    return %c0_i32, %c0_i32_0 : i32, i32
  }
  func.func @transform_9(%arg0: i32) -> (i32, i32) {
    %c0_i32 = arith.constant 0 : i32
    %c0_i32_0 = arith.constant 0 : i32
    return %c0_i32, %arg0 : i32, i32
  }
}

</mosaic_0001>

<llo_original>
// kernel: tpu_custom_call.1
$region0: #{tpu_custom_call.1}
  #allocation0 [shape = 'u32[]', space=smem, size = 0x4, offset = 0x4, fixed_abs, tag = 'smem constant byte address 0x4 - core index']
  #allocation1 [shape = 'u32[72,128]{1,0:T(1,128)}', space=vmem, size = 0x9000, scoped, tag = 'internal scratch']
  %s0 = inlined_call_operand.hbm [shape: f32[64,256], index: 0, kind: input, shape index: {}]
  %s1 = inlined_call_operand.hbm [shape: f32[64,512], index: 1, kind: input, shape index: {}]
  %s2 = inlined_call_operand.vmem [shape: f32[32,32], index: 2, kind: input, shape index: {}]
  %s3 = inlined_call_operand.vmem [shape: f32[32,32], index: 3, kind: input, shape index: {}]
  %s4 = inlined_call_operand.vmem [shape: f32[32,1], index: 4, kind: input, shape index: {}]
  %s5 = inlined_call_operand.vmem [shape: f32[16,32], index: 5, kind: input, shape index: {}]
  %s6 = inlined_call_operand.vmem [shape: f32[16,1], index: 6, kind: input, shape index: {}]
  %s7 = inlined_call_operand.vmem [shape: f32[16,1], index: 7, kind: input, shape index: {}]
  %s8 = inlined_call_operand.vmem [shape: f32[32,1], index: 8, kind: input, shape index: {}]
  %s9 = inlined_call_operand.hbm [shape: f32[1,256], index: 9, kind: output, shape index: {}]
  %s10 = sld [smem:[#allocation0]]
  $region77: #{tpu_custom_call.1} parent=0
    _
  %s12 = ssub.s32 1, %s10
  %s13 = scalar_select 0, %s12, %s10
  $region1: #{tpu_custom_call.1} parent=0
    #allocation2 [shape = 'u8[65536]{0}', space=vmem, size = 0x10000, scoped, tag = 'input window, operand 0']
    #allocation3 [shape = 's32[2]{0}', space=sflag, size = 0x8, scoped, tag = 'scoped memory for tpu_custom_call.1']
    #allocation4 [shape = 's32[2]{0}', space=sflag, size = 0x8, scoped, tag = 'scoped memory for tpu_custom_call.1']
    #allocation5 [shape = 'u8[131072]{0}', space=vmem, size = 0x20000, scoped, tag = 'input window, operand 1']
    #allocation6 [shape = 's32[2]{0}', space=sflag, size = 0x8, scoped, tag = 'scoped memory for tpu_custom_call.1']
    #allocation7 [shape = 'u8[1024]{0}', space=vmem, size = 0x400, scoped, tag = 'output window, operand 0']
    %14 = vsyncpa [#allocation3], 0
    %s15 = scalar_lea.sflag [#allocation3], 1
    %16 = vsyncpa %s15, 0
    %17 = vsyncpa [#allocation6], 0
    %s18 = scalar_lea.sflag [#allocation6], 1
    %19 = vsyncpa %s18, 0
    %20 = vsyncpa [#allocation4], 0
    %s21 = scalar_lea.sflag [#allocation4], 1
    %22 = vsyncpa %s21, 0
    loop: start=0, step=1, limit=4
    $region2: #{tpu_custom_call.1} parent=1 // loop_pre_header
      _
    $region3: #{tpu_custom_call.1} parent=1 // loop_header
      %s24 = sphi 0, %s28
      %p25 = scmp.ge.s32.totalorder %s24, 4
      %s34 = sphi 0, %s36
      %s37 = sphi 0, %s34
      %s38 = sphi 0, %s37
      %s54 = sphi 0, %s38
      %s60 = sphi 0, %s62
      %s63 = sphi 0, %s60
      %s64 = sphi 0, %s63
      %s80 = sphi 0, %s64
      %s84 = sphi 0, %s84
      %s86 = sphi 0, %s84
      %s87 = sphi 0, %s86
      %s101 = sphi 0, %s87
      %s105 = sphi 0, %s105
      %s107 = sphi 0, %s105
      %s108 = sphi 0, %s107
      %s122 = sphi 0, %s108
      %s126 = sphi 0, %s126
      %s128 = sphi 0, %s126
      %s129 = sphi 0, %s128
      %s143 = sphi 0, %s129
      %s147 = sphi 0, %s147
      %s149 = sphi 0, %s147
      %s150 = sphi 0, %s149
      %s164 = sphi 0, %s150
      %s168 = sphi 0, %s168
      %s170 = sphi 0, %s168
      %s171 = sphi 0, %s170
      %s185 = sphi 0, %s171
      %s189 = sphi 0, %s189
      %s191 = sphi 0, %s189
      %s192 = sphi 0, %s191
      %s206 = sphi 0, %s192
      %s210 = sphi 0, %s210
      %s212 = sphi 0, %s210
      %s213 = sphi 0, %s212
      %s227 = sphi 0, %s213
      %s233 = sphi 0, %s235
      %s236 = sphi 0, %s233
      %s237 = sphi 0, %s236
      %s253 = sphi 0, %s237
    $region4: #{tpu_custom_call.1} parent=1 // loop_header_branch
      %27 = sbr.rel (%p25) target = $region8
    $region5: #{tpu_custom_call.1} parent=1 // loop_body
      %s29 = ssub.s32 %s24, 1
      %s30 = ssub.s32 %s24, 2
      %s31 = sadd.s32 %s24, 1
      %s32 = ssub.s32 %s24, %s31
      %p33 = scmp.eq.s32.totalorder %s32, 0
      %s35 = sadd.s32 %s34, 1
      %s36 = scalar_select %p33, %s34, %s35
      %p39 = pneg %p33
      %p40 = scmp.eq.s32.totalorder %s24, 1
      %p41 = por %p39, %p40
      %p42 = scmp.ne.s32.totalorder %s34, %s37
      %p43 = scmp.eq.s32.totalorder %s24, 0
      %p44 = por %p42, %p43
      %p45 = scmp.ne.s32.totalorder %s34, %s37
      %p46 = scmp.eq.s32.totalorder %s29, 1
      %p47 = por %p45, %p46
      %p48 = scmp.ne.s32.totalorder %s37, %s38
      %p49 = scmp.eq.s32.totalorder %s29, 0
      %p50 = por %p48, %p49
      %p51 = scmp.ne.s32.totalorder %s37, %s38
      %p52 = scmp.eq.s32.totalorder %s30, 1
      %p53 = por %p51, %p52
      %p55 = scmp.ne.s32.totalorder %s38, %s54
      %p56 = scmp.eq.s32.totalorder %s30, 0
      %p57 = por %p55, %p56
      %s58 = ssub.s32 %s24, %s31
      %p59 = scmp.eq.s32.totalorder %s58, 0
      %s61 = sadd.s32 %s60, 1
      %s62 = scalar_select %p59, %s60, %s61
      %p65 = pneg %p59
      %p66 = scmp.eq.s32.totalorder %s24, 1
      %p67 = por %p65, %p66
      %p68 = scmp.ne.s32.totalorder %s60, %s63
      %p69 = scmp.eq.s32.totalorder %s24, 0
      %p70 = por %p68, %p69
      %p71 = scmp.ne.s32.totalorder %s60, %s63
      %p72 = scmp.eq.s32.totalorder %s29, 1
      %p73 = por %p71, %p72
      %p74 = scmp.ne.s32.totalorder %s63, %s64
      %p75 = scmp.eq.s32.totalorder %s29, 0
      %p76 = por %p74, %p75
      %p77 = scmp.ne.s32.totalorder %s63, %s64
      %p78 = scmp.eq.s32.totalorder %s30, 1
      %p79 = por %p77, %p78
      %p81 = scmp.ne.s32.totalorder %s64, %s80
      %p82 = scmp.eq.s32.totalorder %s30, 0
      %p83 = por %p81, %p82
      %s85 = sadd.s32 %s84, 1
      %p88 = scmp.eq.s32.totalorder %s24, 1
      %p89 = scmp.ne.s32.totalorder %s84, %s86
      %p90 = scmp.eq.s32.totalorder %s24, 0
      %p91 = por %p89, %p90
      %p92 = scmp.ne.s32.totalorder %s84, %s86
      %p93 = scmp.eq.s32.totalorder %s29, 1
      %p94 = por %p92, %p93
      %p95 = scmp.ne.s32.totalorder %s86, %s87
      %p96 = scmp.eq.s32.totalorder %s29, 0
      %p97 = por %p95, %p96
      %p98 = scmp.ne.s32.totalorder %s86, %s87
      %p99 = scmp.eq.s32.totalorder %s30, 1
      %p100 = por %p98, %p99
      %p102 = scmp.ne.s32.totalorder %s87, %s101
      %p103 = scmp.eq.s32.totalorder %s30, 0
      %p104 = por %p102, %p103
      %s106 = sadd.s32 %s105, 1
      %p109 = scmp.eq.s32.totalorder %s24, 1
      %p110 = scmp.ne.s32.totalorder %s105, %s107
      %p111 = scmp.eq.s32.totalorder %s24, 0
      %p112 = por %p110, %p111
      %p113 = scmp.ne.s32.totalorder %s105, %s107
      %p114 = scmp.eq.s32.totalorder %s29, 1
      %p115 = por %p113, %p114
      %p116 = scmp.ne.s32.totalorder %s107, %s108
      %p117 = scmp.eq.s32.totalorder %s29, 0
      %p118 = por %p116, %p117
      %p119 = scmp.ne.s32.totalorder %s107, %s108
      %p120 = scmp.eq.s32.totalorder %s30, 1
      %p121 = por %p119, %p120
      %p123 = scmp.ne.s32.totalorder %s108, %s122
      %p124 = scmp.eq.s32.totalorder %s30, 0
      %p125 = por %p123, %p124
      %s127 = sadd.s32 %s126, 1
      %p130 = scmp.eq.s32.totalorder %s24, 1
      %p131 = scmp.ne.s32.totalorder %s126, %s128
      %p132 = scmp.eq.s32.totalorder %s24, 0
      %p133 = por %p131, %p132
      %p134 = scmp.ne.s32.totalorder %s126, %s128
      %p135 = scmp.eq.s32.totalorder %s29, 1
      %p136 = por %p134, %p135
      %p137 = scmp.ne.s32.totalorder %s128, %s129
      %p138 = scmp.eq.s32.totalorder %s29, 0
      %p139 = por %p137, %p138
      %p140 = scmp.ne.s32.totalorder %s128, %s129
      %p141 = scmp.eq.s32.totalorder %s30, 1
      %p142 = por %p140, %p141
      %p144 = scmp.ne.s32.totalorder %s129, %s143
      %p145 = scmp.eq.s32.totalorder %s30, 0
      %p146 = por %p144, %p145
      %s148 = sadd.s32 %s147, 1
      %p151 = scmp.eq.s32.totalorder %s24, 1
      %p152 = scmp.ne.s32.totalorder %s147, %s149
      %p153 = scmp.eq.s32.totalorder %s24, 0
      %p154 = por %p152, %p153
      %p155 = scmp.ne.s32.totalorder %s147, %s149
      %p156 = scmp.eq.s32.totalorder %s29, 1
      %p157 = por %p155, %p156
      %p158 = scmp.ne.s32.totalorder %s149, %s150
      %p159 = scmp.eq.s32.totalorder %s29, 0
      %p160 = por %p158, %p159
      %p161 = scmp.ne.s32.totalorder %s149, %s150
      %p162 = scmp.eq.s32.totalorder %s30, 1
      %p163 = por %p161, %p162
      %p165 = scmp.ne.s32.totalorder %s150, %s164
      %p166 = scmp.eq.s32.totalorder %s30, 0
      %p167 = por %p165, %p166
      %s169 = sadd.s32 %s168, 1
      %p172 = scmp.eq.s32.totalorder %s24, 1
      %p173 = scmp.ne.s32.totalorder %s168, %s170
      %p174 = scmp.eq.s32.totalorder %s24, 0
      %p175 = por %p173, %p174
      %p176 = scmp.ne.s32.totalorder %s168, %s170
      %p177 = scmp.eq.s32.totalorder %s29, 1
      %p178 = por %p176, %p177
      %p179 = scmp.ne.s32.totalorder %s170, %s171
      %p180 = scmp.eq.s32.totalorder %s29, 0
      %p181 = por %p179, %p180
      %p182 = scmp.ne.s32.totalorder %s170, %s171
      %p183 = scmp.eq.s32.totalorder %s30, 1
      %p184 = por %p182, %p183
      %p186 = scmp.ne.s32.totalorder %s171, %s185
      %p187 = scmp.eq.s32.totalorder %s30, 0
      %p188 = por %p186, %p187
      %s190 = sadd.s32 %s189, 1
      %p193 = scmp.eq.s32.totalorder %s24, 1
      %p194 = scmp.ne.s32.totalorder %s189, %s191
      %p195 = scmp.eq.s32.totalorder %s24, 0
      %p196 = por %p194, %p195
      %p197 = scmp.ne.s32.totalorder %s189, %s191
      %p198 = scmp.eq.s32.totalorder %s29, 1
      %p199 = por %p197, %p198
      %p200 = scmp.ne.s32.totalorder %s191, %s192
      %p201 = scmp.eq.s32.totalorder %s29, 0
      %p202 = por %p200, %p201
      %p203 = scmp.ne.s32.totalorder %s191, %s192
      %p204 = scmp.eq.s32.totalorder %s30, 1
      %p205 = por %p203, %p204
      %p207 = scmp.ne.s32.totalorder %s192, %s206
      %p208 = scmp.eq.s32.totalorder %s30, 0
      %p209 = por %p207, %p208
      %s211 = sadd.s32 %s210, 1
      %p214 = scmp.eq.s32.totalorder %s24, 1
      %p215 = scmp.ne.s32.totalorder %s210, %s212
      %p216 = scmp.eq.s32.totalorder %s24, 0
      %p217 = por %p215, %p216
      %p218 = scmp.ne.s32.totalorder %s210, %s212
      %p219 = scmp.eq.s32.totalorder %s29, 1
      %p220 = por %p218, %p219
      %p221 = scmp.ne.s32.totalorder %s212, %s213
      %p222 = scmp.eq.s32.totalorder %s29, 0
      %p223 = por %p221, %p222
      %p224 = scmp.ne.s32.totalorder %s212, %s213
      %p225 = scmp.eq.s32.totalorder %s30, 1
      %p226 = por %p224, %p225
      %p228 = scmp.ne.s32.totalorder %s213, %s227
      %p229 = scmp.eq.s32.totalorder %s30, 0
      %p230 = por %p228, %p229
      %s231 = ssub.s32 %s24, %s31
      %p232 = scmp.eq.s32.totalorder %s231, 0
      %s234 = sadd.s32 %s233, 1
      %s235 = scalar_select %p232, %s233, %s234
      %p238 = pneg %p232
      %p239 = scmp.eq.s32.totalorder %s24, 1
      %p240 = por %p238, %p239
      %p241 = scmp.ne.s32.totalorder %s233, %s236
      %p242 = scmp.eq.s32.totalorder %s24, 0
      %p243 = por %p241, %p242
      %p244 = scmp.ne.s32.totalorder %s233, %s236
      %p245 = scmp.eq.s32.totalorder %s29, 1
      %p246 = por %p244, %p245
      %p247 = scmp.ne.s32.totalorder %s236, %s237
      %p248 = scmp.eq.s32.totalorder %s29, 0
      %p249 = por %p247, %p248
      %p250 = scmp.ne.s32.totalorder %s236, %s237
      %p251 = scmp.eq.s32.totalorder %s30, 1
      %p252 = por %p250, %p251
      %p254 = scmp.ne.s32.totalorder %s237, %s253
      %p255 = scmp.eq.s32.totalorder %s30, 0
      %p256 = por %p254, %p255
      %p257 = scmp.le.s32.totalorder 1, %s24
      %p258 = scmp.lt.s32.totalorder %s24, 3
      %p259 = pnand %p257, %p258
      %p260 = pneg %p259
      // Predicated region
      $region9: #{tpu_custom_call.1} parent=5 // pred_check
        _
      $region10: #{tpu_custom_call.1} parent=5 // pred_check_branch
        %262 = sbr.rel (%p259) target = $region12
      $region11: #{tpu_custom_call.1} parent=5 // pred_region
        %s263 = ssub.s32 %s24, 1
        // Predicated region
        $region13: #{tpu_custom_call.1} parent=11 // pred_check
          %p264 = pneg %p97
        $region14: #{tpu_custom_call.1} parent=11 // pred_check_branch
          %266 = sbr.rel (%p264) target = $region16
        $region15: #{tpu_custom_call.1} parent=11 // pred_region
          _
        $region16: #{tpu_custom_call.1} parent=11 // pred_fallthru
          _
        // Predicated region
        $region17: #{tpu_custom_call.1} parent=11 // pred_check
          %p267 = pneg %p118
        $region18: #{tpu_custom_call.1} parent=11 // pred_check_branch
          %269 = sbr.rel (%p267) target = $region20
        $region19: #{tpu_custom_call.1} parent=11 // pred_region
          _
        $region20: #{tpu_custom_call.1} parent=11 // pred_fallthru
          _
        // Predicated region
        $region21: #{tpu_custom_call.1} parent=11 // pred_check
          %p270 = pneg %p139
        $region22: #{tpu_custom_call.1} parent=11 // pred_check_branch
          %272 = sbr.rel (%p270) target = $region24
        $region23: #{tpu_custom_call.1} parent=11 // pred_region
          _
        $region24: #{tpu_custom_call.1} parent=11 // pred_fallthru
          _
        // Predicated region
        $region25: #{tpu_custom_call.1} parent=11 // pred_check
          %p273 = pneg %p160
        $region26: #{tpu_custom_call.1} parent=11 // pred_check_branch
          %275 = sbr.rel (%p273) target = $region28
        $region27: #{tpu_custom_call.1} parent=11 // pred_region
          _
        $region28: #{tpu_custom_call.1} parent=11 // pred_fallthru
          _
        // Predicated region
        $region29: #{tpu_custom_call.1} parent=11 // pred_check
          %p276 = pneg %p181
        $region30: #{tpu_custom_call.1} parent=11 // pred_check_branch
          %278 = sbr.rel (%p276) target = $region32
        $region31: #{tpu_custom_call.1} parent=11 // pred_region
          _
        $region32: #{tpu_custom_call.1} parent=11 // pred_fallthru
          _
        // Predicated region
        $region33: #{tpu_custom_call.1} parent=11 // pred_check
          %p279 = pneg %p202
        $region34: #{tpu_custom_call.1} parent=11 // pred_check_branch
          %281 = sbr.rel (%p279) target = $region36
        $region35: #{tpu_custom_call.1} parent=11 // pred_region
          _
        $region36: #{tpu_custom_call.1} parent=11 // pred_fallthru
          _
        // Predicated region
        $region37: #{tpu_custom_call.1} parent=11 // pred_check
          %p282 = pneg %p223
        $region38: #{tpu_custom_call.1} parent=11 // pred_check_branch
          %284 = sbr.rel (%p282) target = $region40
        $region39: #{tpu_custom_call.1} parent=11 // pred_region
          _
        $region40: #{tpu_custom_call.1} parent=11 // pred_fallthru
          _
      $region12: #{tpu_custom_call.1} parent=5 // pred_fallthru
        _
      %p285 = scmp.lt.s32.totalorder %s24, 2
      // Predicated region
      $region41: #{tpu_custom_call.1} parent=5 // pred_check
        %p286 = pneg %p285
      $region42: #{tpu_custom_call.1} parent=5 // pred_check_branch
        %288 = sbr.rel (%p286) target = $region44
      $region43: #{tpu_custom_call.1} parent=5 // pred_region
        // Predicated region
        $region45: #{tpu_custom_call.1} parent=43 // pred_check
          %p289 = pneg %p44
        $region46: #{tpu_custom_call.1} parent=43 // pred_check_branch
          %291 = sbr.rel (%p289) target = $region48
        $region47: #{tpu_custom_call.1} parent=43 // pred_region
          %s292 = sand.u32 %s34, 1
          %s293 = scalar_lea.sflag [#allocation3], %s292
          %s294 = sand.u32 %s34, 1
          %s295 = smul.addr %s294, 64
          %s296 = scalar_lea.vmem [#allocation2], %s295
          %298 = vsyncadd %s293, 0
          %s299 = smul.addr %s24, 8
          %s300 = scalar_lea.hbm %s0, %s299
          %s301 = sshll.u32 %s300, 4
          %s302 = int_to_ptr.hbm [resolvable:$true] %s301
          %s303 = sshll.u32 %s296, 4
          %s304 = int_to_ptr.vmem [resolvable:$true] %s303
          %309 = dma.hbm_to_vmem [thread:$0]  %s302, 1024, %s304, %s293, 256, 128, 8
        $region48: #{tpu_custom_call.1} parent=43 // pred_fallthru
          _
        // Predicated region
        $region49: #{tpu_custom_call.1} parent=43 // pred_check
          %p310 = pneg %p70
        $region50: #{tpu_custom_call.1} parent=43 // pred_check_branch
          %312 = sbr.rel (%p310) target = $region52
        $region51: #{tpu_custom_call.1} parent=43 // pred_region
          %s313 = sand.u32 %s60, 1
          %s314 = scalar_lea.sflag [#allocation6], %s313
          %s315 = sand.u32 %s60, 1
          %s316 = smul.addr %s315, 128
          %s317 = scalar_lea.vmem [#allocation5], %s316
          %s318 = smul.u32 2, %s24
          %320 = vsyncadd %s314, 0
          %s321 = smul.addr %s318, 8
          %s322 = scalar_lea.hbm %s1, %s321
          %s323 = sshll.u32 %s322, 4
          %s324 = int_to_ptr.hbm [resolvable:$true] %s323
          %s325 = sshll.u32 %s317, 4
          %s326 = int_to_ptr.vmem [resolvable:$true] %s325
          %331 = dma.hbm_to_vmem [thread:$0]  %s324, 2048, %s326, %s314, 512, 256, 16
        $region52: #{tpu_custom_call.1} parent=43 // pred_fallthru
          _
      $region44: #{tpu_custom_call.1} parent=5 // pred_fallthru
        _
      %p332 = scmp.le.s32.totalorder 1, %s24
      %p333 = scmp.lt.s32.totalorder %s24, 3
      %p334 = pnand %p332, %p333
      %p335 = pneg %p334
      // Predicated region
      $region53: #{tpu_custom_call.1} parent=5 // pred_check
        _
      $region54: #{tpu_custom_call.1} parent=5 // pred_check_branch
        %337 = sbr.rel (%p334) target = $region56
      $region55: #{tpu_custom_call.1} parent=5 // pred_region
        %s338 = ssub.s32 %s24, 1
        %s339 = sand.u32 %s37, 1
        %s340 = scalar_lea.sflag [#allocation3], %s339
        %s341 = sand.u32 %s37, 1
        %s342 = smul.addr %s341, 64
        %s343 = scalar_lea.vmem [#allocation2], %s342
        // Predicated region
        $region57: #{tpu_custom_call.1} parent=55 // pred_check
          %p344 = pneg %p50
        $region58: #{tpu_custom_call.1} parent=55 // pred_check_branch
          %346 = sbr.rel (%p344) target = $region60
        $region59: #{tpu_custom_call.1} parent=55 // pred_region
          %348 = dma.done %s340, 1024
        $region60: #{tpu_custom_call.1} parent=55 // pred_fallthru
          _
        %s349 = sand.u32 %s63, 1
        %s350 = scalar_lea.sflag [#allocation6], %s349
        %s351 = sand.u32 %s63, 1
        %s352 = smul.addr %s351, 128
        %s353 = scalar_lea.vmem [#allocation5], %s352
        // Predicated region
        $region61: #{tpu_custom_call.1} parent=55 // pred_check
          %p354 = pneg %p76
        $region62: #{tpu_custom_call.1} parent=55 // pred_check_branch
          %356 = sbr.rel (%p354) target = $region64
        $region63: #{tpu_custom_call.1} parent=55 // pred_region
          %358 = dma.done %s350, 2048
        $region64: #{tpu_custom_call.1} parent=55 // pred_fallthru
          _
        %s359 = sand.u32 %s37, 1
        %s360 = scalar_lea.sflag [#allocation3], %s359
        %s361 = sand.u32 %s37, 1
        %s362 = smul.addr %s361, 64
        %s363 = scalar_lea.vmem [#allocation2], %s362
        %p364 = pneg %p50
        %p365 = pneg %p47
        %s366 = sand.u32 %s63, 1
        %s367 = scalar_lea.sflag [#allocation6], %s366
        %s368 = sand.u32 %s63, 1
        %s369 = smul.addr %s368, 128
        %s370 = scalar_lea.vmem [#allocation5], %s369
        %p371 = pneg %p76
        %p372 = pneg %p73
        %p373 = pneg %p97
        %p374 = pneg %p94
        %p375 = pneg %p118
        %p376 = pneg %p115
        %p377 = pneg %p139
        %p378 = pneg %p136
        %p379 = pneg %p160
        %p380 = pneg %p157
        %p381 = pneg %p181
        %p382 = pneg %p178
        %p383 = pneg %p202
        %p384 = pneg %p199
        %p385 = pneg %p223
        %p386 = pneg %p220
        %p387 = pneg %p249
        %p388 = pneg %p246
        %s389 = sand.u32 %s236, 1
        %s390 = scalar_lea.sflag [#allocation4], %s389
        %s391 = sand.u32 %s236, 1
        %s392 = scalar_lea.vmem [#allocation7], %s391
        %s393 = smul.u32 2, %s29
        %v394 = vld [vmem:[%s343] sm:$0xff]
        %v395 = vld [vmem:[%s343 + $0x8] sm:$0xff]
        %v396 = vld [vmem:[%s343 + $0x10] sm:$0xff]
        %v397 = vld [vmem:[%s343 + $0x18] sm:$0xff]
        %v398 = vld [vmem:[%s343 + $0x20] sm:$0xff]
        %v399 = vld [vmem:[%s343 + $0x28] sm:$0xff]
        %v400 = vld [vmem:[%s343 + $0x30] sm:$0xff]
        %v401 = vld [vmem:[%s343 + $0x38] sm:$0xff]
        %v402 = vld [vmem:[%s353] sm:$0xff]
        %v403 = vld [vmem:[%s353 + $0x8] sm:$0xff]
        %v404 = vld [vmem:[%s353 + $0x10] sm:$0xff]
        %v405 = vld [vmem:[%s353 + $0x18] sm:$0xff]
        %v406 = vld [vmem:[%s353 + $0x20] sm:$0xff]
        %v407 = vld [vmem:[%s353 + $0x28] sm:$0xff]
        %v408 = vld [vmem:[%s353 + $0x30] sm:$0xff]
        %v409 = vld [vmem:[%s353 + $0x38] sm:$0xff]
        %v410 = vld [vmem:[%s353 + $0x40] sm:$0xff]
        %v411 = vld [vmem:[%s353 + $0x48] sm:$0xff]
        %v412 = vld [vmem:[%s353 + $0x50] sm:$0xff]
        %v413 = vld [vmem:[%s353 + $0x58] sm:$0xff]
        %v414 = vld [vmem:[%s353 + $0x60] sm:$0xff]
        %v415 = vld [vmem:[%s353 + $0x68] sm:$0xff]
        %v416 = vld [vmem:[%s353 + $0x70] sm:$0xff]
        %v417 = vld [vmem:[%s353 + $0x78] sm:$0xff]
        %v418 = vld [vmem:[%s2] sm:$0xff]
        %v419 = vld [vmem:[%s2 + $0x8] sm:$0xff]
        %v420 = vld [vmem:[%s2 + $0x10] sm:$0xff]
        %v421 = vld [vmem:[%s2 + $0x18] sm:$0xff]
        %v422 = vld [vmem:[%s4] sm:$0xff]
        %v423 = vld [vmem:[%s4 + $0x8] sm:$0xff]
        %v424 = vld [vmem:[%s4 + $0x10] sm:$0xff]
        %v425 = vld [vmem:[%s4 + $0x18] sm:$0xff]
        %427 = vset.pattern.permute.xlu0 0
        %428 = vperm.xlu0 %427, %v422
        %v429 = vpop.permute.xlu0 %428
        %432 = vset.pattern.permute.xlu0 0
        %433 = vperm.xlu0 %432, %v423
        %v434 = vpop.permute.xlu0 %433
        %437 = vset.pattern.permute.xlu0 0
        %438 = vperm.xlu0 %437, %v424
        %v439 = vpop.permute.xlu0 %438
        %442 = vset.pattern.permute.xlu0 0
        %443 = vperm.xlu0 %442, %v425
        %v444 = vpop.permute.xlu0 %443
        %vm446 = vcmask 261120
        %v448 = vsel %vm446, %v418, 0
        %v451 = vsel %vm446, %v419, 0
        %v454 = vsel %vm446, %v420, 0
        %v457 = vsel %vm446, %v421, 0
        %459 = vmatpush.msra.mxu0 0.0
        %460 = vmatpush.msra.mxu0 0.0
        %461 = vmatpush.msra.mxu0 0.0
        %462 = vmatpush.msra.mxu0 0.0
        %463 = vmatpush.msra.mxu0 0.0
        %464 = vmatpush.msra.mxu0 0.0
        %465 = vmatpush.msra.mxu0 0.0
        %466 = vmatpush.msra.mxu0 0.0
        %467 = vmatpush.msra.mxu0 0.0
        %468 = vmatpush.msra.mxu0 0.0
        %469 = vmatpush.msra.mxu0 0.0
        %470 = vmatpush.msra.mxu0 0.0
        %471 = vmatpush.msra.mxu0 %v397
        %472 = vmatpush.msra.mxu0 %v396
        %473 = vmatpush.msra.mxu0 %v395
        %474 = vmatpush.msra.mxu0 %v394
        %475 = vmatmul.f32.gmra.mxu0 %v448
        %v476 = vpop.f32.mrf.mxu0
        %v477 = vadd.f32 %v429, %v476
        %478 = vmatmul.f32.gmra.mxu0 %v451
        %v479 = vpop.f32.mrf.mxu0
        %v480 = vadd.f32 %v434, %v479
        %481 = vmatmul.f32.gmra.mxu0 %v454
        %v482 = vpop.f32.mrf.mxu0
        %v483 = vadd.f32 %v439, %v482
        %484 = vmatmul.f32.gmra.mxu0 %v457
        %v485 = vpop.f32.mrf.mxu0
        %v486 = vadd.f32 %v444, %v485
        %487 = vdwg.mxu0
        %v488 = vld [vmem:[%s3] sm:$0xff]
        %v489 = vld [vmem:[%s3 + $0x8] sm:$0xff]
        %v490 = vld [vmem:[%s3 + $0x10] sm:$0xff]
        %v491 = vld [vmem:[%s3 + $0x18] sm:$0xff]
        %v493 = vsel %vm446, %v488, 0
        %v496 = vsel %vm446, %v489, 0
        %v499 = vsel %vm446, %v490, 0
        %v502 = vsel %vm446, %v491, 0
        %504 = vmatpush.msra.mxu0 0.0
        %505 = vmatpush.msra.mxu0 0.0
        %506 = vmatpush.msra.mxu0 0.0
        %507 = vmatpush.msra.mxu0 0.0
        %508 = vmatpush.msra.mxu0 0.0
        %509 = vmatpush.msra.mxu0 0.0
        %510 = vmatpush.msra.mxu0 0.0
        %511 = vmatpush.msra.mxu0 0.0
        %512 = vmatpush.msra.mxu0 0.0
        %513 = vmatpush.msra.mxu0 0.0
        %514 = vmatpush.msra.mxu0 0.0
        %515 = vmatpush.msra.mxu0 0.0
        %516 = vmatpush.msra.mxu0 %v408
        %517 = vmatpush.msra.mxu0 %v406
        %518 = vmatpush.msra.mxu0 %v404
        %519 = vmatpush.msra.mxu0 %v402
        %520 = vmatmul.f32.gmra.mxu0 %v493
        %v521 = vpop.f32.mrf.mxu0
        %v522 = vadd.f32 %v477, %v521
        %523 = vmatmul.f32.gmra.mxu0 %v496
        %v524 = vpop.f32.mrf.mxu0
        %v525 = vadd.f32 %v480, %v524
        %526 = vmatmul.f32.gmra.mxu0 %v499
        %v527 = vpop.f32.mrf.mxu0
        %v528 = vadd.f32 %v483, %v527
        %529 = vmatmul.f32.gmra.mxu0 %v502
        %v530 = vpop.f32.mrf.mxu0
        %v531 = vadd.f32 %v486, %v530
        %532 = vdwg.mxu0
        %533 = vmatpush.msra.mxu0 0.0
        %534 = vmatpush.msra.mxu0 0.0
        %535 = vmatpush.msra.mxu0 0.0
        %536 = vmatpush.msra.mxu0 0.0
        %537 = vmatpush.msra.mxu0 0.0
        %538 = vmatpush.msra.mxu0 0.0
        %539 = vmatpush.msra.mxu0 0.0
        %540 = vmatpush.msra.mxu0 0.0
        %541 = vmatpush.msra.mxu0 0.0
        %542 = vmatpush.msra.mxu0 0.0
        %543 = vmatpush.msra.mxu0 0.0
        %544 = vmatpush.msra.mxu0 0.0
        %545 = vmatpush.msra.mxu0 %v409
        %546 = vmatpush.msra.mxu0 %v407
        %547 = vmatpush.msra.mxu0 %v405
        %548 = vmatpush.msra.mxu0 %v403
        %549 = vmatmul.f32.gmra.mxu0 %v493
        %v550 = vpop.f32.mrf.mxu0
        %v551 = vadd.f32 %v477, %v550
        %552 = vmatmul.f32.gmra.mxu0 %v496
        %v553 = vpop.f32.mrf.mxu0
        %v554 = vadd.f32 %v480, %v553
        %555 = vmatmul.f32.gmra.mxu0 %v499
        %v556 = vpop.f32.mrf.mxu0
        %v557 = vadd.f32 %v483, %v556
        %558 = vmatmul.f32.gmra.mxu0 %v502
        %v559 = vpop.f32.mrf.mxu0
        %v560 = vadd.f32 %v486, %v559
        %561 = vdwg.mxu0
        %v562 = vmax.f32 %v522, 0.0
        %v563 = vmax.f32 %v551, 0.0
        %v564 = vmax.f32 %v525, 0.0
        %v565 = vmax.f32 %v554, 0.0
        %v566 = vmax.f32 %v528, 0.0
        %v567 = vmax.f32 %v557, 0.0
        %v568 = vmax.f32 %v531, 0.0
        %v569 = vmax.f32 %v560, 0.0
        %v570 = vld [vmem:[%s5] sm:$0xff]
        %v571 = vld [vmem:[%s5 + $0x8] sm:$0xff]
        %v572 = vld [vmem:[%s6] sm:$0xff]
        %v573 = vld [vmem:[%s6 + $0x8] sm:$0xff]
        %575 = vset.pattern.permute.xlu0 0
        %576 = vperm.xlu0 %575, %v572
        %v577 = vpop.permute.xlu0 %576
        %580 = vset.pattern.permute.xlu0 0
        %581 = vperm.xlu0 %580, %v573
        %v582 = vpop.permute.xlu0 %581
        %v585 = vsel %vm446, %v570, 0
        %v588 = vsel %vm446, %v571, 0
        %590 = vmatpush.msra.mxu0 0.0
        %591 = vmatpush.msra.mxu0 0.0
        %592 = vmatpush.msra.mxu0 0.0
        %593 = vmatpush.msra.mxu0 0.0
        %594 = vmatpush.msra.mxu0 0.0
        %595 = vmatpush.msra.mxu0 0.0
        %596 = vmatpush.msra.mxu0 0.0
        %597 = vmatpush.msra.mxu0 0.0
        %598 = vmatpush.msra.mxu0 0.0
        %599 = vmatpush.msra.mxu0 0.0
        %600 = vmatpush.msra.mxu0 0.0
        %601 = vmatpush.msra.mxu0 0.0
        %602 = vmatpush.msra.mxu0 %v568
        %603 = vmatpush.msra.mxu0 %v566
        %604 = vmatpush.msra.mxu0 %v564
        %605 = vmatpush.msra.mxu0 %v562
        %606 = vmatmul.f32.gmra.mxu0 %v585
        %v607 = vpop.f32.mrf.mxu0
        %v608 = vadd.f32 %v577, %v607
        %609 = vmatmul.f32.gmra.mxu0 %v588
        %v610 = vpop.f32.mrf.mxu0
        %v611 = vadd.f32 %v582, %v610
        %612 = vdwg.mxu0
        %613 = vmatpush.msra.mxu0 0.0
        %614 = vmatpush.msra.mxu0 0.0
        %615 = vmatpush.msra.mxu0 0.0
        %616 = vmatpush.msra.mxu0 0.0
        %617 = vmatpush.msra.mxu0 0.0
        %618 = vmatpush.msra.mxu0 0.0
        %619 = vmatpush.msra.mxu0 0.0
        %620 = vmatpush.msra.mxu0 0.0
        %621 = vmatpush.msra.mxu0 0.0
        %622 = vmatpush.msra.mxu0 0.0
        %623 = vmatpush.msra.mxu0 0.0
        %624 = vmatpush.msra.mxu0 0.0
        %625 = vmatpush.msra.mxu0 %v569
        %626 = vmatpush.msra.mxu0 %v567
        %627 = vmatpush.msra.mxu0 %v565
        %628 = vmatpush.msra.mxu0 %v563
        %629 = vmatmul.f32.gmra.mxu0 %v585
        %v630 = vpop.f32.mrf.mxu0
        %v631 = vadd.f32 %v577, %v630
        %632 = vmatmul.f32.gmra.mxu0 %v588
        %v633 = vpop.f32.mrf.mxu0
        %v634 = vadd.f32 %v582, %v633
        %635 = vdwg.mxu0
        %v636 = vmax.f32 %v608, 0.0
        %v637 = vmax.f32 %v631, 0.0
        %v638 = vmax.f32 %v611, 0.0
        %v639 = vmax.f32 %v634, 0.0
        %v640 = vsub.f32 %v636, %v637
        %v641 = vsub.f32 %v638, %v639
        %v642 = vsub.f32 %v410, %v411
        %v643 = vsub.f32 %v412, %v413
        %v644 = vsub.f32 %v414, %v415
        %v645 = vsub.f32 %v416, %v417
        %v646 = vmul.f32 %v398, %v642
        %v647 = vmul.f32 %v399, %v643
        %v648 = vmul.f32 %v400, %v644
        %v649 = vmul.f32 %v401, %v645
        %v650 = vld [vmem:[%s7] sm:$0xff]
        %v651 = vld [vmem:[%s7 + $0x8] sm:$0xff]
        %653 = vset.pattern.permute.xlu0 0
        %654 = vperm.xlu0 %653, %v650
        %v655 = vpop.permute.xlu0 %654
        %658 = vset.pattern.permute.xlu0 0
        %659 = vperm.xlu0 %658, %v651
        %v660 = vpop.permute.xlu0 %659
        %v662 = vmul.f32 %v640, %v655
        %v663 = vmul.f32 %v641, %v660
        %v664 = vadd.f32 %v662, %v663
        %v665 = vrot.slane %v664, 4
        %v666 = vadd.f32 %v664, %v665
        %v667 = vrot.slane %v666, 2
        %v668 = vadd.f32 %v666, %v667
        %v669 = vrot.slane %v668, 1
        %v670 = vadd.f32 %v668, %v669
        %v671 = vld [vmem:[%s8] sm:$0xff]
        %v672 = vld [vmem:[%s8 + $0x8] sm:$0xff]
        %v673 = vld [vmem:[%s8 + $0x10] sm:$0xff]
        %v674 = vld [vmem:[%s8 + $0x18] sm:$0xff]
        %676 = vset.pattern.permute.xlu0 0
        %677 = vperm.xlu0 %676, %v671
        %v678 = vpop.permute.xlu0 %677
        %681 = vset.pattern.permute.xlu0 0
        %682 = vperm.xlu0 %681, %v672
        %v683 = vpop.permute.xlu0 %682
        %686 = vset.pattern.permute.xlu0 0
        %687 = vperm.xlu0 %686, %v673
        %v688 = vpop.permute.xlu0 %687
        %691 = vset.pattern.permute.xlu0 0
        %692 = vperm.xlu0 %691, %v674
        %v693 = vpop.permute.xlu0 %692
        %v695 = vmul.f32 %v646, %v678
        %v696 = vmul.f32 %v647, %v683
        %v697 = vmul.f32 %v648, %v688
        %v698 = vmul.f32 %v649, %v693
        %v699 = vadd.f32 %v695, %v696
        %v700 = vadd.f32 %v699, %v697
        %v701 = vadd.f32 %v700, %v698
        %v702 = vrot.slane %v701, 4
        %v703 = vadd.f32 %v701, %v702
        %v704 = vrot.slane %v703, 2
        %v705 = vadd.f32 %v703, %v704
        %v706 = vrot.slane %v705, 1
        %v707 = vadd.f32 %v705, %v706
        %v708 = vadd.f32 %v670, %v707
        %v709 = vmin.f32 %v708, 0.0
        %v710 = vand.u32 2147483647, %v708
        %v711 = vsub.f32 0.0, %v710
        %v712 = vmul.f32 %v711, 1.442695
        %v713 = vpow.pop %v712
        %v714 = vadd.f32 %v713, 1.0
        %v715 = vlog2.pop %v714
        %v716 = vmul.f32 %v715, 0.6931472
        %v717 = vsub.f32 %v709, %v716
        %v718 = vmul.f32 %v394, %v394
        %v719 = vmul.f32 %v395, %v395
        %v720 = vmul.f32 %v396, %v396
        %v721 = vmul.f32 %v397, %v397
        %v722 = vadd.f32 %v718, %v719
        %v723 = vadd.f32 %v722, %v720
        %v724 = vadd.f32 %v723, %v721
        %v725 = vrot.slane %v724, 4
        %v726 = vadd.f32 %v724, %v725
        %v727 = vrot.slane %v726, 2
        %v728 = vadd.f32 %v726, %v727
        %v729 = vrot.slane %v728, 1
        %v730 = vadd.f32 %v728, %v729
        %v731 = vrsqrt.pop %v730
        %v732 = vmul.f32 %v731, %v730
        %v733 = vmul.f32 %v732, %v731
        %v734 = vmul.f32 0.5, %v733
        %v735 = vsub.f32 1.5, %v734
        %v736 = vmul.f32 %v731, %v735
        %v737 = vmul.f32 %v730, %v736
        %vm738 = vcmp.eq.f32.partialorder %v730, inf
        %v739 = vsel %vm738, %v730, %v737
        %vm740 = vcmp.eq.f32.partialorder %v730, 0.0
        %v741 = vand.u32 %v730, 2147483648
        %v742 = vsel %vm740, %v741, %v739
        %v743 = vmul.f32 %v398, %v398
        %v744 = vmul.f32 %v399, %v399
        %v745 = vmul.f32 %v400, %v400
        %v746 = vmul.f32 %v401, %v401
        %v747 = vadd.f32 %v743, %v744
        %v748 = vadd.f32 %v747, %v745
        %v749 = vadd.f32 %v748, %v746
        %v750 = vrot.slane %v749, 4
        %v751 = vadd.f32 %v749, %v750
        %v752 = vrot.slane %v751, 2
        %v753 = vadd.f32 %v751, %v752
        %v754 = vrot.slane %v753, 1
        %v755 = vadd.f32 %v753, %v754
        %v756 = vrsqrt.pop %v755
        %v757 = vmul.f32 %v756, %v755
        %v758 = vmul.f32 %v757, %v756
        %v759 = vmul.f32 0.5, %v758
        %v760 = vsub.f32 1.5, %v759
        %v761 = vmul.f32 %v756, %v760
        %v762 = vmul.f32 %v755, %v761
        %vm763 = vcmp.eq.f32.partialorder %v755, inf
        %v764 = vsel %vm763, %v755, %v762
        %vm765 = vcmp.eq.f32.partialorder %v755, 0.0
        %v766 = vand.u32 %v755, 2147483648
        %v767 = vsel %vm765, %v766, %v764
        %v768 = vadd.f32 %v742, %v767
        %v769 = vmul.f32 %v402, %v402
        %v770 = vmul.f32 %v404, %v404
        %v771 = vmul.f32 %v406, %v406
        %v772 = vmul.f32 %v408, %v408
        %v773 = vadd.f32 %v769, %v770
        %v774 = vadd.f32 %v773, %v771
        %v775 = vadd.f32 %v774, %v772
        %v776 = vrot.slane %v775, 4
        %v777 = vadd.f32 %v775, %v776
        %v778 = vrot.slane %v777, 2
        %v779 = vadd.f32 %v777, %v778
        %v780 = vrot.slane %v779, 1
        %v781 = vadd.f32 %v779, %v780
        %v782 = vrsqrt.pop %v781
        %v783 = vmul.f32 %v782, %v781
        %v784 = vmul.f32 %v783, %v782
        %v785 = vmul.f32 0.5, %v784
        %v786 = vsub.f32 1.5, %v785
        %v787 = vmul.f32 %v782, %v786
        %v788 = vmul.f32 %v781, %v787
        %vm789 = vcmp.eq.f32.partialorder %v781, inf
        %v790 = vsel %vm789, %v781, %v788
        %vm791 = vcmp.eq.f32.partialorder %v781, 0.0
        %v792 = vand.u32 %v781, 2147483648
        %v793 = vsel %vm791, %v792, %v790
        %v794 = vadd.f32 %v768, %v793
        %v795 = vmul.f32 %v410, %v410
        %v796 = vmul.f32 %v412, %v412
        %v797 = vmul.f32 %v414, %v414
        %v798 = vmul.f32 %v416, %v416
        %v799 = vadd.f32 %v795, %v796
        %v800 = vadd.f32 %v799, %v797
        %v801 = vadd.f32 %v800, %v798
        %v802 = vrot.slane %v801, 4
        %v803 = vadd.f32 %v801, %v802
        %v804 = vrot.slane %v803, 2
        %v805 = vadd.f32 %v803, %v804
        %v806 = vrot.slane %v805, 1
        %v807 = vadd.f32 %v805, %v806
        %v808 = vrsqrt.pop %v807
        %v809 = vmul.f32 %v808, %v807
        %v810 = vmul.f32 %v809, %v808
        %v811 = vmul.f32 0.5, %v810
        %v812 = vsub.f32 1.5, %v811
        %v813 = vmul.f32 %v808, %v812
        %v814 = vmul.f32 %v807, %v813
        %vm815 = vcmp.eq.f32.partialorder %v807, inf
        %v816 = vsel %vm815, %v807, %v814
        %vm817 = vcmp.eq.f32.partialorder %v807, 0.0
        %v818 = vand.u32 %v807, 2147483648
        %v819 = vsel %vm817, %v818, %v816
        %v820 = vadd.f32 %v794, %v819
        %v821 = vmul.f32 %v403, %v403
        %v822 = vmul.f32 %v405, %v405
        %v823 = vmul.f32 %v407, %v407
        %v824 = vmul.f32 %v409, %v409
        %v825 = vadd.f32 %v821, %v822
        %v826 = vadd.f32 %v825, %v823
        %v827 = vadd.f32 %v826, %v824
        %v828 = vrot.slane %v827, 4
        %v829 = vadd.f32 %v827, %v828
        %v830 = vrot.slane %v829, 2
        %v831 = vadd.f32 %v829, %v830
        %v832 = vrot.slane %v831, 1
        %v833 = vadd.f32 %v831, %v832
        %v834 = vrsqrt.pop %v833
        %v835 = vmul.f32 %v834, %v833
        %v836 = vmul.f32 %v835, %v834
        %v837 = vmul.f32 0.5, %v836
        %v838 = vsub.f32 1.5, %v837
        %v839 = vmul.f32 %v834, %v838
        %v840 = vmul.f32 %v833, %v839
        %vm841 = vcmp.eq.f32.partialorder %v833, inf
        %v842 = vsel %vm841, %v833, %v840
        %vm843 = vcmp.eq.f32.partialorder %v833, 0.0
        %v844 = vand.u32 %v833, 2147483648
        %v845 = vsel %vm843, %v844, %v842
        %v846 = vadd.f32 %v820, %v845
        %v847 = vmul.f32 %v411, %v411
        %v848 = vmul.f32 %v413, %v413
        %v849 = vmul.f32 %v415, %v415
        %v850 = vmul.f32 %v417, %v417
        %v851 = vadd.f32 %v847, %v848
        %v852 = vadd.f32 %v851, %v849
        %v853 = vadd.f32 %v852, %v850
        %v854 = vrot.slane %v853, 4
        %v855 = vadd.f32 %v853, %v854
        %v856 = vrot.slane %v855, 2
        %v857 = vadd.f32 %v855, %v856
        %v858 = vrot.slane %v857, 1
        %v859 = vadd.f32 %v857, %v858
        %v860 = vrsqrt.pop %v859
        %v861 = vmul.f32 %v860, %v859
        %v862 = vmul.f32 %v861, %v860
        %v863 = vmul.f32 0.5, %v862
        %v864 = vsub.f32 1.5, %v863
        %v865 = vmul.f32 %v860, %v864
        %v866 = vmul.f32 %v859, %v865
        %vm867 = vcmp.eq.f32.partialorder %v859, inf
        %v868 = vsel %vm867, %v859, %v866
        %vm869 = vcmp.eq.f32.partialorder %v859, 0.0
        %v870 = vand.u32 %v859, 2147483648
        %v871 = vsel %vm869, %v870, %v868
        %v872 = vadd.f32 %v846, %v871
        %v873 = vmul.f32 %v872, 0.01
        %v874 = vsub.f32 0.0, %v717
        %v875 = vadd.f32 %v874, %v873
        %876 = vst [vmem:[%s392] sm:$0x1] %v875
        %s877 = sand.u32 %s236, 1
        %s878 = scalar_lea.sflag [#allocation4], %s877
        %s879 = sand.u32 %s236, 1
        %s880 = scalar_lea.vmem [#allocation7], %s879
        // Predicated region
        $region65: #{tpu_custom_call.1} parent=55 // pred_check
          %p881 = pneg %p246
        $region66: #{tpu_custom_call.1} parent=55 // pred_check_branch
          %883 = sbr.rel (%p881) target = $region68
        $region67: #{tpu_custom_call.1} parent=55 // pred_region
          %885 = vsyncadd %s878, 0
          %s886 = scalar_lea.hbm %s9, %s29
          %s888 = sshll.u32 %s880, 4
          %s889 = int_to_ptr.vmem [resolvable:$true] %s888
          %s890 = sshll.u32 %s886, 4
          %s891 = int_to_ptr.hbm [resolvable:$true] %s890
          %893 = dma.vmem_to_hbm [thread:$0]  %s889, 16, %s891, %s878
        $region68: #{tpu_custom_call.1} parent=55 // pred_fallthru
          _
      $region56: #{tpu_custom_call.1} parent=5 // pred_fallthru
        _
      %p894 = scmp.le.s32.totalorder 2, %s24
      // Predicated region
      $region69: #{tpu_custom_call.1} parent=5 // pred_check
        %p895 = pneg %p894
      $region70: #{tpu_custom_call.1} parent=5 // pred_check_branch
        %897 = sbr.rel (%p895) target = $region72
      $region71: #{tpu_custom_call.1} parent=5 // pred_region
        %s898 = ssub.s32 %s24, 2
        // Predicated region
        $region73: #{tpu_custom_call.1} parent=71 // pred_check
          %p899 = pneg %p252
        $region74: #{tpu_custom_call.1} parent=71 // pred_check_branch
          %901 = sbr.rel (%p899) target = $region76
        $region75: #{tpu_custom_call.1} parent=71 // pred_region
          %s902 = sand.u32 %s237, 1
          %s903 = scalar_lea.sflag [#allocation4], %s902
          %s904 = sand.u32 %s237, 1
          %s905 = scalar_lea.vmem [#allocation7], %s904
          %907 = dma.done %s903, 16
        $region76: #{tpu_custom_call.1} parent=71 // pred_fallthru
          _
      $region72: #{tpu_custom_call.1} parent=5 // pred_fallthru
        _
    $region6: #{tpu_custom_call.1} parent=1 // loop_footer
      %s28 = sadd.s32 1, %s24
    $region7: #{tpu_custom_call.1} parent=1 // loop_footer_branch
      %23 = sbr.rel target = $region3
    $region8: #{tpu_custom_call.1} parent=1 // loop_exit
      _
    %908 = vsyncpa [#allocation3], 1
    %s909 = scalar_lea.sflag [#allocation3], 1
    %910 = vsyncpa %s909, 1
    %911 = vsyncpa [#allocation6], 1
    %s912 = scalar_lea.sflag [#allocation6], 1
    %913 = vsyncpa %s912, 1
    %914 = vsyncpa [#allocation4], 1
    %s915 = scalar_lea.sflag [#allocation4], 1
    %916 = vsyncpa %s915, 1

</llo_original>
